<compile_context>
chip_gen: v6e
topology: v6e:2x2x1
jax: 0.10.0
libtpu: 0.0.40
codegen_flags: <defaults>
</compile_context>

<pallas_src>
import numpy as np
import jax
import jax.numpy as jnp
from jax.experimental import pallas as pl
from jax.experimental.pallas import tpu as pltpu


# -----------------------------------------------------------------------------
# Pallas kernel: fused ActorCritic.evaluate (continuous branch), feature-major
# -----------------------------------------------------------------------------
def evaluate_kernel(state_ref, action_ref,
                    w1_ref, b1_ref, w2_ref, b2_ref, w3_ref, b3_ref,
                    gauss_ref, out_ref):
    A = action_ref.shape[-1]

    # Batch tile arrives batch-major (TB, S) f32.  Cast (VPU) + transpose (XLU) in-kernel:
    # both ride slots that are idle while the MXU streams, and the wrapper no longer does a
    # separate HBM cast pass.
    xT = state_ref[...].T.astype(w1_ref.dtype)                       # [S, TB] bf16

    # Feature-major fused actor|critic MLP: batch is the MXU N dimension, so push count is
    # driven by the (small) feature dims instead of TB/8 per layer.
    h = jnp.tanh(jnp.dot(w1_ref[...], xT,
                         preferred_element_type=jnp.float32) + b1_ref[...])   # [H, TB] f32
    h = jnp.tanh(jnp.dot(w2_ref[...], h.astype(w2_ref.dtype),
                         preferred_element_type=jnp.float32) + b2_ref[...])   # [H, TB] f32
    # NOTE: if EUP (tanh) becomes the binding slot on v6e/v7x, cast to bf16 before jnp.tanh
    # (bf16 EUP ~2x); keep f32 tanh on v5e (no bf16 EUP path).
    y = jnp.dot(w3_ref[...], h.astype(w3_ref.dtype),
                preferred_element_type=jnp.float32) + b3_ref[...]             # [A+1, TB] f32

    mu = jnp.tanh(y[:A, :])                                          # actor head  [A, TB]
    value = y[A:A + 1, :]                                            # critic head [1, TB]

    # ---- diagonal-Gaussian log_prob (constants hoisted to the wrapper) ----
    gauss = gauss_ref[...]                                           # [A+1, 1] f32
    inv_var = gauss[:A, :]                                           # [A, 1]
    logp_const = gauss[A:A + 1, :]                                   # [1, 1]

    diffT = action_ref[...].T - mu                                   # [A, TB] f32
    maha = jnp.sum(diffT * diffT * inv_var, axis=0, keepdims=True)   # [1, TB] (XLU reduce)
    logp = -0.5 * maha + logp_const                                  # [1, TB]

    # ---- lane-dense packed output: sublane 0 = log_prob, sublane 1 = value ----
    row = jax.lax.broadcasted_iota(jnp.int32, out_ref.shape, 0)
    out_ref[...] = jnp.where(row == 0, logp, value)                  # [2, TB] full-lane store


# -----------------------------------------------------------------------------
# Wrapper
# -----------------------------------------------------------------------------
def _round_up(x, m):
    return (x + m - 1) // m * m


def _block_diag(a, b):
    ra, ca = a.shape
    rb, cb = b.shape
    top = jnp.concatenate([a, jnp.zeros((ra, cb), a.dtype)], axis=1)
    bot = jnp.concatenate([jnp.zeros((rb, ca), b.dtype), b], axis=1)
    return jnp.concatenate([top, bot], axis=0)


def pack_params(params, action_var, compute_dtype=jnp.bfloat16):
    """Fuse actor/critic layers into transposed (feature-major) packed weights + constants."""
    w1 = jnp.concatenate([params["aw1"], params["cw1"]], axis=1).T.astype(compute_dtype)  # [H, S]
    b1 = jnp.concatenate([params["ab1"], params["cb1"]], axis=1).T.astype(jnp.float32)    # [H, 1]
    w2 = _block_diag(params["aw2"], params["cw2"]).T.astype(compute_dtype)                # [H, H]
    b2 = jnp.concatenate([params["ab2"], params["cb2"]], axis=1).T.astype(jnp.float32)    # [H, 1]
    w3 = _block_diag(params["aw3"], params["cw3"]).T.astype(compute_dtype)                # [A+1, H]
    b3 = jnp.concatenate([params["ab3"], params["cb3"]], axis=1).T.astype(jnp.float32)    # [A+1, 1]

    var = action_var.reshape(-1, 1).astype(jnp.float32)              # [A, 1]
    A = var.shape[0]
    inv_var = 1.0 / var
    logdet = jnp.sum(jnp.log(var))
    logp_const = (-0.5 * (A * np.log(2.0 * np.pi) + logdet)).reshape(1, 1)
    gauss = jnp.concatenate([inv_var, logp_const], axis=0)           # [A+1, 1]
    return w1, b1, w2, b2, w3, b3, gauss


def actor_critic_evaluate(state, action, params, action_var,
                          *, block_b=4096, compute_dtype=jnp.bfloat16):
    """Pallas-backed equivalent of ActorCritic.evaluate (is_discrete == 0).

    Returns (action_logprobs [B], state_value [B], dist_entropy [B])."""
    B, S = state.shape
    A = action.shape[1]
    w1, b1, w2, b2, w3, b3, gauss = pack_params(params, action_var, compute_dtype)

    # Batch lives in the 128-lane dim inside the kernel -> TB must be a multiple of 128.
    # Cap TB at ~half the (rounded) batch so there are >= 2 grid steps whenever B > 128:
    # on v7x (2 TCs/chip) the "parallel" batch axis then shards across both cores; on
    # v5e/v6e (1 TC) the extra step only costs ~0.35 us.
    TB = max(128, min(int(block_b), _round_up((B + 1) // 2, 128)))
    Bp = _round_up(B, TB)
    if Bp != B:
        # Zero padding keeps the tail rows finite (no NaN/Inf); they are sliced off below.
        state = jnp.pad(state, ((0, Bp - B), (0, 0)))
        action = jnp.pad(action, ((0, Bp - B), (0, 0)))
    # Keep state/action f32: the bf16 cast happens in-kernel (one HBM read, no separate
    # cast pass), and the Gaussian epilogue stays exact in f32.
    state = state.astype(jnp.float32)
    action = action.astype(jnp.float32)

    const = lambda i: (0, 0)          # packed weights stay resident in VMEM across the grid
    out = pl.pallas_call(
        evaluate_kernel,
        out_shape=jax.ShapeDtypeStruct((2, Bp), jnp.float32),
        grid=(Bp // TB,),
        in_specs=[
            pl.BlockSpec((TB, S), lambda i: (i, 0)),
            pl.BlockSpec((TB, A), lambda i: (i, 0)),
            pl.BlockSpec(w1.shape, const),
            pl.BlockSpec(b1.shape, const),
            pl.BlockSpec(w2.shape, const),
            pl.BlockSpec(b2.shape, const),
            pl.BlockSpec(w3.shape, const),
            pl.BlockSpec(b3.shape, const),
            pl.BlockSpec(gauss.shape, const),
        ],
        out_specs=pl.BlockSpec((2, TB), lambda i: (0, i)),
        compiler_params=pltpu.CompilerParams(
            dimension_semantics=("parallel",),
            # VMEM pressure is dominated by the f32 [128, TB] intermediates (~512*TB bytes
            # each) plus double-buffered (TB,S)/(TB,A) input tiles; at the default TB=4096
            # this fits every generation's default scoped limit (16 MiB v5e, 32 MiB
            # v6e/v7x).  Only raise the limit when TB is pushed to ~8-16K rows, and budget
            # against v7x's 64 MiB physical VMEM, not v6e's 128 MiB.
            vmem_limit_bytes=(64 << 20) if TB >= 8192 else None,
        ),
    )(state, action, w1, b1, w2, b2, w3, b3, gauss)

    logp = out[0, :B]
    value = out[1, :B]

    # Entropy of MultivariateNormal(mu, diag(var)) does not depend on the data -> wrapper.
    var = action_var.reshape(-1).astype(jnp.float32)
    ent_scalar = 0.5 * A * (1.0 + np.log(2.0 * np.pi)) + 0.5 * jnp.sum(jnp.log(var))
    ent = jnp.broadcast_to(ent_scalar, (B,))
    return logp, value, ent


# -----------------------------------------------------------------------------
# Pure-JAX f32 reference (mirrors the PyTorch module)
# -----------------------------------------------------------------------------
def reference_evaluate(state, action, params, action_var):
    h = jnp.tanh(state @ params["aw1"] + params["ab1"])
    h = jnp.tanh(h @ params["aw2"] + params["ab2"])
    mu = jnp.tanh(h @ params["aw3"] + params["ab3"])

    c = jnp.tanh(state @ params["cw1"] + params["cb1"])
    c = jnp.tanh(c @ params["cw2"] + params["cb2"])
    v = c @ params["cw3"] + params["cb3"]

    var = action_var.reshape(-1)
    A = mu.shape[-1]
    diff = action - mu
    logdet = jnp.sum(jnp.log(var))
    logp = -0.5 * (jnp.sum(diff * diff / var, axis=-1) + A * np.log(2.0 * np.pi) + logdet)
    ent = 0.5 * A * (1.0 + np.log(2.0 * np.pi)) + 0.5 * logdet
    return logp, v[:, 0], jnp.full_like(logp, ent)


# -----------------------------------------------------------------------------
# Deterministic parameter construction (PyTorch nn.Linear-style uniform init)
# -----------------------------------------------------------------------------
def make_params(key, state_dim, action_dim, actor_layer, critic_layer):
    def linear(key, fan_in, fan_out):
        kw, kb = jax.random.split(key)
        bound = 1.0 / np.sqrt(fan_in)
        w = jax.random.uniform(kw, (fan_in, fan_out), jnp.float32, -bound, bound)
        b = jax.random.uniform(kb, (1, fan_out), jnp.float32, -bound, bound)
        return w, b

    keys = jax.random.split(key, 6)
    p = {}
    p["aw1"], p["ab1"] = linear(keys[0], state_dim, actor_layer[0])
    p["aw2"], p["ab2"] = linear(keys[1], actor_layer[0], actor_layer[1])
    p["aw3"], p["ab3"] = linear(keys[2], actor_layer[1], action_dim)
    p["cw1"], p["cb1"] = linear(keys[3], state_dim, critic_layer[0])
    p["cw2"], p["cb2"] = linear(keys[4], critic_layer[0], critic_layer[1])
    p["cw3"], p["cb3"] = linear(keys[5], critic_layer[1], 1)
    return p


# TODO(synk): act() draws samples from the distribution (torch .sample()) and the
# is_discrete==1 Categorical branch are not implemented in the kernel (RNG sampling /
# per-agent softmax are not the PPO-update compute hot path).

if __name__ == "__main__":
    state_dim = 32
    action_dim = 8
    action_std = 0.5
    actor_layer = [64, 64]
    critic_layer = [64, 64]

    key = jax.random.PRNGKey(0)
    kp, ks1, ka1, ks2, ka2 = jax.random.split(key, 5)

    params = make_params(kp, state_dim, action_dim, actor_layer, critic_layer)
    action_var = jnp.full((1, action_dim), action_std * action_std, dtype=jnp.float32)

    def check(batch, ks, ka, block_b):
        state = jax.random.normal(ks, (batch, state_dim), jnp.float32)
        action = jax.random.normal(ka, (batch, action_dim), jnp.float32)

        logp, value, ent = actor_critic_evaluate(state, action, params, action_var,
                                                 block_b=block_b)
        jax.block_until_ready((logp, value, ent))

        logp_r, value_r, ent_r = reference_evaluate(state, action, params, action_var)
        # bf16 matmul inputs with f32 accumulation -> loosened tolerance vs. f32 reference.
        assert np.allclose(np.asarray(logp), np.asarray(logp_r), rtol=5e-2, atol=5e-2), \
            "logprob mismatch"
        assert np.allclose(np.asarray(value), np.asarray(value_r), rtol=5e-2, atol=5e-2), \
            "value mismatch"
        assert np.allclose(np.asarray(ent), np.asarray(ent_r), rtol=1e-5, atol=1e-5), \
            "entropy mismatch"

    # Small, padding-exercising case (B not a multiple of 128), single grid step.
    check(12, ks1, ka1, block_b=4096)
    # Multi-step grid case: TB capped at ceil(B/2)=256 -> 2 tiles, both TCs on v7x.
    check(512, ks2, ka2, block_b=4096)

    print("KERNEL_OK")
</pallas_src>

<mosaic_0001>
module attributes {stable_mosaic.version = 11 : i64} {
  func.func @evaluate_kernel(%arg0: i32, %arg1: memref<128x32xf32, #tpu.memory_space<vmem>>, %arg2: memref<128x8xf32, #tpu.memory_space<vmem>>, %arg3: memref<128x32xbf16, #tpu.memory_space<vmem>>, %arg4: memref<128x1xf32, #tpu.memory_space<vmem>>, %arg5: memref<128x128xbf16, #tpu.memory_space<vmem>>, %arg6: memref<128x1xf32, #tpu.memory_space<vmem>>, %arg7: memref<9x128xbf16, #tpu.memory_space<vmem>>, %arg8: memref<9x1xf32, #tpu.memory_space<vmem>>, %arg9: memref<9x1xf32, #tpu.memory_space<vmem>>, %arg10: memref<2x128xf32, #tpu.memory_space<vmem>>) attributes {dimension_semantics = [#tpu.dimension_semantics<parallel>], iteration_bounds = array<i64: 1>, scalar_prefetch = 0 : i64, scratch_operands = 0 : i64, tpu.core_type = #tpu.core_type<tc>, window_params = [{transform_indices = @transform_0, window_bounds = array<i64: 128, 32>}, {transform_indices = @transform_1, window_bounds = array<i64: 128, 8>}, {pipeline_mode = #tpu.pipeline_mode<synchronous>, transform_indices = @transform_2, window_bounds = array<i64: 128, 32>}, {pipeline_mode = #tpu.pipeline_mode<synchronous>, transform_indices = @transform_3, window_bounds = array<i64: 128, 1>}, {pipeline_mode = #tpu.pipeline_mode<synchronous>, transform_indices = @transform_4, window_bounds = array<i64: 128, 128>}, {pipeline_mode = #tpu.pipeline_mode<synchronous>, transform_indices = @transform_5, window_bounds = array<i64: 128, 1>}, {pipeline_mode = #tpu.pipeline_mode<synchronous>, transform_indices = @transform_6, window_bounds = array<i64: 9, 128>}, {pipeline_mode = #tpu.pipeline_mode<synchronous>, transform_indices = @transform_7, window_bounds = array<i64: 9, 1>}, {pipeline_mode = #tpu.pipeline_mode<synchronous>, transform_indices = @transform_8, window_bounds = array<i64: 9, 1>}, {transform_indices = @transform_9, window_bounds = array<i64: 2, 128>}]} {
    %c0 = arith.constant 0 : index
    %c0_0 = arith.constant 0 : index
    %0 = vector.load %arg1[%c0, %c0_0] : memref<128x32xf32, #tpu.memory_space<vmem>>, vector<128x32xf32>
    %1 = tpu.transpose %0, [1, 0] : vector<128x32xf32> -> vector<32x128xf32>
    %2 = arith.truncf %1 : vector<32x128xf32> to vector<32x128xbf16>
    %c0_1 = arith.constant 0 : index
    %c0_2 = arith.constant 0 : index
    %3 = vector.load %arg3[%c0_1, %c0_2] : memref<128x32xbf16, #tpu.memory_space<vmem>>, vector<128x32xbf16>
    %cst = arith.constant dense<0.000000e+00> : vector<128x128xf32>
    %4 = tpu.matmul %3, %2, %cst {dimension_numbers = #tpu.dot_dimension_numbers<[1], [0], [0], [1], [0, 0, 1, 1], [], []>} : vector<128x32xbf16>, vector<32x128xbf16>, vector<128x128xf32> -> vector<128x128xf32>
    %c0_3 = arith.constant 0 : index
    %c0_4 = arith.constant 0 : index
    %5 = vector.load %arg4[%c0_3, %c0_4] : memref<128x1xf32, #tpu.memory_space<vmem>>, vector<128x1xf32>
    %6 = vector.broadcast %5 : vector<128x1xf32> to vector<128x128xf32>
    %7 = arith.addf %4, %6 : vector<128x128xf32>
    %8 = math.tanh %7 : vector<128x128xf32>
    %c0_5 = arith.constant 0 : index
    %c0_6 = arith.constant 0 : index
    %9 = vector.load %arg5[%c0_5, %c0_6] : memref<128x128xbf16, #tpu.memory_space<vmem>>, vector<128x128xbf16>
    %10 = arith.truncf %8 : vector<128x128xf32> to vector<128x128xbf16>
    %cst_7 = arith.constant dense<0.000000e+00> : vector<128x128xf32>
    %11 = tpu.matmul %9, %10, %cst_7 {dimension_numbers = #tpu.dot_dimension_numbers<[1], [0], [0], [1], [0, 0, 1, 1], [], []>} : vector<128x128xbf16>, vector<128x128xbf16>, vector<128x128xf32> -> vector<128x128xf32>
    %c0_8 = arith.constant 0 : index
    %c0_9 = arith.constant 0 : index
    %12 = vector.load %arg6[%c0_8, %c0_9] : memref<128x1xf32, #tpu.memory_space<vmem>>, vector<128x1xf32>
    %13 = vector.broadcast %12 : vector<128x1xf32> to vector<128x128xf32>
    %14 = arith.addf %11, %13 : vector<128x128xf32>
    %15 = math.tanh %14 : vector<128x128xf32>
    %c0_10 = arith.constant 0 : index
    %c0_11 = arith.constant 0 : index
    %16 = vector.load %arg7[%c0_10, %c0_11] : memref<9x128xbf16, #tpu.memory_space<vmem>>, vector<9x128xbf16>
    %17 = arith.truncf %15 : vector<128x128xf32> to vector<128x128xbf16>
    %cst_12 = arith.constant dense<0.000000e+00> : vector<9x128xf32>
    %18 = tpu.matmul %16, %17, %cst_12 {dimension_numbers = #tpu.dot_dimension_numbers<[1], [0], [0], [1], [0, 0, 1, 1], [], []>} : vector<9x128xbf16>, vector<128x128xbf16>, vector<9x128xf32> -> vector<9x128xf32>
    %c0_13 = arith.constant 0 : index
    %c0_14 = arith.constant 0 : index
    %19 = vector.load %arg8[%c0_13, %c0_14] : memref<9x1xf32, #tpu.memory_space<vmem>>, vector<9x1xf32>
    %20 = vector.broadcast %19 : vector<9x1xf32> to vector<9x128xf32>
    %21 = arith.addf %18, %20 : vector<9x128xf32>
    %22 = vector.extract_strided_slice %21 {offsets = [0, 0], sizes = [8, 128], strides = [1, 1]} : vector<9x128xf32> to vector<8x128xf32>
    %23 = math.tanh %22 : vector<8x128xf32>
    %24 = vector.extract_strided_slice %21 {offsets = [8, 0], sizes = [1, 128], strides = [1, 1]} : vector<9x128xf32> to vector<1x128xf32>
    %c0_15 = arith.constant 0 : index
    %c0_16 = arith.constant 0 : index
    %25 = vector.load %arg9[%c0_15, %c0_16] : memref<9x1xf32, #tpu.memory_space<vmem>>, vector<9x1xf32>
    %26 = vector.extract_strided_slice %25 {offsets = [0, 0], sizes = [8, 1], strides = [1, 1]} : vector<9x1xf32> to vector<8x1xf32>
    %27 = vector.extract_strided_slice %25 {offsets = [8, 0], sizes = [1, 1], strides = [1, 1]} : vector<9x1xf32> to vector<1x1xf32>
    %c0_17 = arith.constant 0 : index
    %c0_18 = arith.constant 0 : index
    %28 = vector.load %arg2[%c0_17, %c0_18] : memref<128x8xf32, #tpu.memory_space<vmem>>, vector<128x8xf32>
    %29 = tpu.transpose %28, [1, 0] : vector<128x8xf32> -> vector<8x128xf32>
    %30 = arith.subf %29, %23 : vector<8x128xf32>
    %31 = arith.mulf %30, %30 : vector<8x128xf32>
    %32 = vector.broadcast %26 : vector<8x1xf32> to vector<8x128xf32>
    %33 = arith.mulf %31, %32 : vector<8x128xf32>
    %cst_19 = arith.constant dense<0.000000e+00> : vector<128xf32>
    %34 = vector.multi_reduction <add>, %33, %cst_19 [0] : vector<8x128xf32> to vector<128xf32>
    %35 = vector.shape_cast %34 : vector<128xf32> to vector<1x128xf32>
    %cst_20 = arith.constant -5.000000e-01 : f32
    %36 = vector.broadcast %cst_20 : f32 to vector<1x128xf32>
    %37 = arith.mulf %36, %35 : vector<1x128xf32>
    %38 = vector.broadcast %27 : vector<1x1xf32> to vector<1x128xf32>
    %39 = arith.addf %37, %38 : vector<1x128xf32>
    %40 = tpu.iota {dimensions = array<i32: 0>} : vector<2x128xi32>
    %c0_i32 = arith.constant 0 : i32
    %41 = vector.broadcast %c0_i32 : i32 to vector<2x128xi32>
    %42 = arith.cmpi eq, %40, %41 : vector<2x128xi32>
    %43 = vector.shape_cast %39 : vector<1x128xf32> to vector<1x128xf32>
    %44 = vector.broadcast %43 : vector<1x128xf32> to vector<2x128xf32>
    %45 = vector.shape_cast %24 : vector<1x128xf32> to vector<1x128xf32>
    %46 = vector.broadcast %45 : vector<1x128xf32> to vector<2x128xf32>
    %47 = arith.select %42, %44, %46 : vector<2x128xi1>, vector<2x128xf32>
    %c0_21 = arith.constant 0 : index
    %c0_22 = arith.constant 0 : index
    %48 = vector.load %arg10[%c0_21, %c0_22] : memref<2x128xf32, #tpu.memory_space<vmem>>, vector<2x128xf32>
    tpu.vector_store %arg10[%c0_21, %c0_22], %47 {strides = array<i32>} : memref<2x128xf32, #tpu.memory_space<vmem>>, vector<2x128xf32>,
    return
  }
  func.func @transform_0(%arg0: i32) -> (i32, i32) {
    %c0_i32 = arith.constant 0 : i32
    %c0_i32_0 = arith.constant 0 : i32
    return %arg0, %c0_i32 : i32, i32
  }
  func.func @transform_1(%arg0: i32) -> (i32, i32) {
    %c0_i32 = arith.constant 0 : i32
    %c0_i32_0 = arith.constant 0 : i32
    return %arg0, %c0_i32 : i32, i32
  }
  func.func @transform_2(%arg0: i32) -> (i32, i32) {
    %c0_i32 = arith.constant 0 : i32
    %c0_i32_0 = arith.constant 0 : i32
    %c0_i32_1 = arith.constant 0 : i32
    return %c0_i32, %c0_i32_0 : i32, i32
  }
  func.func @transform_3(%arg0: i32) -> (i32, i32) {
    %c0_i32 = arith.constant 0 : i32
    %c0_i32_0 = arith.constant 0 : i32
    %c0_i32_1 = arith.constant 0 : i32
    return %c0_i32, %c0_i32_0 : i32, i32
  }
  func.func @transform_4(%arg0: i32) -> (i32, i32) {
    %c0_i32 = arith.constant 0 : i32
    %c0_i32_0 = arith.constant 0 : i32
    %c0_i32_1 = arith.constant 0 : i32
    return %c0_i32, %c0_i32_0 : i32, i32
  }
  func.func @transform_5(%arg0: i32) -> (i32, i32) {
    %c0_i32 = arith.constant 0 : i32
    %c0_i32_0 = arith.constant 0 : i32
    %c0_i32_1 = arith.constant 0 : i32
    return %c0_i32, %c0_i32_0 : i32, i32
  }
  func.func @transform_6(%arg0: i32) -> (i32, i32) {
    %c0_i32 = arith.constant 0 : i32
    %c0_i32_0 = arith.constant 0 : i32
    %c0_i32_1 = arith.constant 0 : i32
    return %c0_i32, %c0_i32_0 : i32, i32
  }
  func.func @transform_7(%arg0: i32) -> (i32, i32) {
    %c0_i32 = arith.constant 0 : i32
    %c0_i32_0 = arith.constant 0 : i32
    %c0_i32_1 = arith.constant 0 : i32
    return %c0_i32, %c0_i32_0 : i32, i32
  }
  func.func @transform_8(%arg0: i32) -> (i32, i32) {
    %c0_i32 = arith.constant 0 : i32
    %c0_i32_0 = arith.constant 0 : i32
    %c0_i32_1 = arith.constant 0 : i32
    return %c0_i32, %c0_i32_0 : i32, i32
  }
  func.func @transform_9(%arg0: i32) -> (i32, i32) {
    %c0_i32 = arith.constant 0 : i32
    %c0_i32_0 = arith.constant 0 : i32
    return %c0_i32, %arg0 : i32, i32
  }
}

</mosaic_0001>

<llo_original>
// kernel: tpu_custom_call.1
$region0: #{tpu_custom_call.1}
  #allocation0 [shape = 'u32[]', space=smem, size = 0x4, offset = 0x4, fixed_abs, tag = 'smem constant byte address 0x4 - core index']
  #allocation1 [shape = 'u32[144,128]{1,0:T(1,128)}', space=vmem, size = 0x12000, scoped, tag = 'internal scratch']
  %s0 = inlined_call_operand.vmem [shape: f32[128,32], index: 0, kind: input, shape index: {}]
  %s1 = inlined_call_operand.vmem [shape: f32[128,8], index: 1, kind: input, shape index: {}]
  %s2 = inlined_call_operand.vmem [shape: bf16[128,32], index: 2, kind: input, shape index: {}]
  %s3 = inlined_call_operand.vmem [shape: f32[128,1], index: 3, kind: input, shape index: {}]
  %s4 = inlined_call_operand.vmem [shape: bf16[128,128], index: 4, kind: input, shape index: {}]
  %s5 = inlined_call_operand.vmem [shape: f32[128,1], index: 5, kind: input, shape index: {}]
  %s6 = inlined_call_operand.vmem [shape: bf16[9,128], index: 6, kind: input, shape index: {}]
  %s7 = inlined_call_operand.vmem [shape: f32[9,1], index: 7, kind: input, shape index: {}]
  %s8 = inlined_call_operand.vmem [shape: f32[9,1], index: 8, kind: input, shape index: {}]
  %s9 = inlined_call_operand.hbm [shape: f32[2,128], index: 9, kind: output, shape index: {}]
  %s10 = sld [smem:[#allocation0]]
  $region46: #{tpu_custom_call.1} parent=0
    _
  %s12 = ssub.s32 1, %s10
  %s13 = scalar_select 0, %s12, %s10
  $region1: #{tpu_custom_call.1} parent=0
    #allocation2 [shape = 'u8[1024]{0}', space=vmem, size = 0x400, scoped, tag = 'output window, operand 0, single buffered']
    #allocation3 [shape = 's32[1]{0}', space=sflag, size = 0x4, scoped, tag = 'scoped memory for tpu_custom_call.1']
    %14 = vsyncpa [#allocation3], 0
    // Predicated region
    $region2: #{tpu_custom_call.1} parent=1 // pred_check
      _
    $region3: #{tpu_custom_call.1} parent=1 // pred_check_branch
      %16 = sbr.rel (0) target = $region5
    $region4: #{tpu_custom_call.1} parent=1 // pred_region
      _
    $region5: #{tpu_custom_call.1} parent=1 // pred_fallthru
      _
    // Predicated region
    $region6: #{tpu_custom_call.1} parent=1 // pred_check
      _
    $region7: #{tpu_custom_call.1} parent=1 // pred_check_branch
      %18 = sbr.rel (0) target = $region9
    $region8: #{tpu_custom_call.1} parent=1 // pred_region
      _
    $region9: #{tpu_custom_call.1} parent=1 // pred_fallthru
      _
    // Predicated region
    $region10: #{tpu_custom_call.1} parent=1 // pred_check
      _
    $region11: #{tpu_custom_call.1} parent=1 // pred_check_branch
      %20 = sbr.rel (0) target = $region13
    $region12: #{tpu_custom_call.1} parent=1 // pred_region
      _
    $region13: #{tpu_custom_call.1} parent=1 // pred_fallthru
      _
    // Predicated region
    $region14: #{tpu_custom_call.1} parent=1 // pred_check
      _
    $region15: #{tpu_custom_call.1} parent=1 // pred_check_branch
      %22 = sbr.rel (0) target = $region17
    $region16: #{tpu_custom_call.1} parent=1 // pred_region
      _
    $region17: #{tpu_custom_call.1} parent=1 // pred_fallthru
      _
    // Predicated region
    $region18: #{tpu_custom_call.1} parent=1 // pred_check
      _
    $region19: #{tpu_custom_call.1} parent=1 // pred_check_branch
      %24 = sbr.rel (0) target = $region21
    $region20: #{tpu_custom_call.1} parent=1 // pred_region
      _
    $region21: #{tpu_custom_call.1} parent=1 // pred_fallthru
      _
    // Predicated region
    $region22: #{tpu_custom_call.1} parent=1 // pred_check
      _
    $region23: #{tpu_custom_call.1} parent=1 // pred_check_branch
      %26 = sbr.rel (0) target = $region25
    $region24: #{tpu_custom_call.1} parent=1 // pred_region
      _
    $region25: #{tpu_custom_call.1} parent=1 // pred_fallthru
      _
    // Predicated region
    $region26: #{tpu_custom_call.1} parent=1 // pred_check
      _
    $region27: #{tpu_custom_call.1} parent=1 // pred_check_branch
      %28 = sbr.rel (0) target = $region29
    $region28: #{tpu_custom_call.1} parent=1 // pred_region
      _
    $region29: #{tpu_custom_call.1} parent=1 // pred_fallthru
      _
    // Predicated region
    $region30: #{tpu_custom_call.1} parent=1 // pred_check
      _
    $region31: #{tpu_custom_call.1} parent=1 // pred_check_branch
      %30 = sbr.rel (0) target = $region33
    $region32: #{tpu_custom_call.1} parent=1 // pred_region
      _
    $region33: #{tpu_custom_call.1} parent=1 // pred_fallthru
      _
    // Predicated region
    $region34: #{tpu_custom_call.1} parent=1 // pred_check
      _
    $region35: #{tpu_custom_call.1} parent=1 // pred_check_branch
      %32 = sbr.rel (0) target = $region37
    $region36: #{tpu_custom_call.1} parent=1 // pred_region
      _
    $region37: #{tpu_custom_call.1} parent=1 // pred_fallthru
      _
    %v34 = vld [vmem:[%s0] sm:$0xff]
    %v35 = vld [vmem:[%s0 + $0x8] sm:$0xff]
    %v36 = vld [vmem:[%s0 + $0x10] sm:$0xff]
    %v37 = vld [vmem:[%s0 + $0x18] sm:$0xff]
    %v38 = vld [vmem:[%s0 + $0x20] sm:$0xff]
    %v39 = vld [vmem:[%s0 + $0x28] sm:$0xff]
    %v40 = vld [vmem:[%s0 + $0x30] sm:$0xff]
    %v41 = vld [vmem:[%s0 + $0x38] sm:$0xff]
    %v42 = vld [vmem:[%s0 + $0x40] sm:$0xff]
    %v43 = vld [vmem:[%s0 + $0x48] sm:$0xff]
    %v44 = vld [vmem:[%s0 + $0x50] sm:$0xff]
    %v45 = vld [vmem:[%s0 + $0x58] sm:$0xff]
    %v46 = vld [vmem:[%s0 + $0x60] sm:$0xff]
    %v47 = vld [vmem:[%s0 + $0x68] sm:$0xff]
    %v48 = vld [vmem:[%s0 + $0x70] sm:$0xff]
    %v49 = vld [vmem:[%s0 + $0x78] sm:$0xff]
    %50 = vxpose.xlu0.b32.start [1/16] %v34, 128
    %51 = vxpose.xlu0.b32.cont [2/16] %v35, 128
    %52 = vxpose.xlu0.b32.cont [3/16] %v36, 128
    %53 = vxpose.xlu0.b32.cont [4/16] %v37, 128
    %54 = vxpose.xlu0.b32.cont [5/16] %v38, 128
    %55 = vxpose.xlu0.b32.cont [6/16] %v39, 128
    %56 = vxpose.xlu0.b32.cont [7/16] %v40, 128
    %57 = vxpose.xlu0.b32.cont [8/16] %v41, 128
    %58 = vxpose.xlu0.b32.cont [9/16] %v42, 128
    %59 = vxpose.xlu0.b32.cont [10/16] %v43, 128
    %60 = vxpose.xlu0.b32.cont [11/16] %v44, 128
    %61 = vxpose.xlu0.b32.cont [12/16] %v45, 128
    %62 = vxpose.xlu0.b32.cont [13/16] %v46, 128
    %63 = vxpose.xlu0.b32.cont [14/16] %v47, 128
    %64 = vxpose.xlu0.b32.cont [15/16] %v48, 128
    %65 = vxpose.xlu0.b32.end [16/16] %v49, 128
    %v66 = vpop.trf.xlu0
    %v67 = vpop.trf.xlu0
    %v68 = vpop.trf.xlu0
    %v69 = vpop.trf.xlu0
    %v70 = vpop.trf.xlu0
    %v71 = vpop.trf.xlu0
    %v72 = vpop.trf.xlu0
    %v73 = vpop.trf.xlu0
    %v74 = vpop.trf.xlu0
    %v75 = vpop.trf.xlu0
    %v76 = vpop.trf.xlu0
    %v77 = vpop.trf.xlu0
    %v78 = vpop.trf.xlu0
    %v79 = vpop.trf.xlu0
    %v80 = vpop.trf.xlu0
    %v81 = vpop.trf.xlu0
    %v82 = vpack.c.bf16 %v67, %v66
    %v83 = vpack.c.bf16 %v69, %v68
    %v84 = vld [vmem:[%s2] sm:$0xf]
    %v85 = vld [vmem:[%s2 + $0x4] sm:$0xf]
    %v86 = vld [vmem:[%s2 + $0x8] sm:$0xf]
    %v87 = vld [vmem:[%s2 + $0xc] sm:$0xf]
    %v88 = vld [vmem:[%s2 + $0x10] sm:$0xf]
    %v89 = vld [vmem:[%s2 + $0x14] sm:$0xf]
    %v90 = vld [vmem:[%s2 + $0x18] sm:$0xf]
    %v91 = vld [vmem:[%s2 + $0x1c] sm:$0xf]
    %v92 = vld [vmem:[%s2 + $0x20] sm:$0xf]
    %v93 = vld [vmem:[%s2 + $0x24] sm:$0xf]
    %v94 = vld [vmem:[%s2 + $0x28] sm:$0xf]
    %v95 = vld [vmem:[%s2 + $0x2c] sm:$0xf]
    %v96 = vld [vmem:[%s2 + $0x30] sm:$0xf]
    %v97 = vld [vmem:[%s2 + $0x34] sm:$0xf]
    %v98 = vld [vmem:[%s2 + $0x38] sm:$0xf]
    %v99 = vld [vmem:[%s2 + $0x3c] sm:$0xf]
    %v100 = vld [vmem:[%s3] sm:$0xff]
    %v101 = vld [vmem:[%s3 + $0x8] sm:$0xff]
    %v102 = vld [vmem:[%s3 + $0x10] sm:$0xff]
    %v103 = vld [vmem:[%s3 + $0x18] sm:$0xff]
    %v104 = vld [vmem:[%s3 + $0x20] sm:$0xff]
    %v105 = vld [vmem:[%s3 + $0x28] sm:$0xff]
    %v106 = vld [vmem:[%s3 + $0x30] sm:$0xff]
    %v107 = vld [vmem:[%s3 + $0x38] sm:$0xff]
    %v108 = vld [vmem:[%s3 + $0x40] sm:$0xff]
    %v109 = vld [vmem:[%s3 + $0x48] sm:$0xff]
    %v110 = vld [vmem:[%s3 + $0x50] sm:$0xff]
    %v111 = vld [vmem:[%s3 + $0x58] sm:$0xff]
    %v112 = vld [vmem:[%s3 + $0x60] sm:$0xff]
    %v113 = vld [vmem:[%s3 + $0x68] sm:$0xff]
    %v114 = vld [vmem:[%s3 + $0x70] sm:$0xff]
    %v115 = vld [vmem:[%s3 + $0x78] sm:$0xff]
    %117 = vset.pattern.permute.xlu0 0
    %118 = vperm.xlu0 %117, %v100
    %v119 = vpop.permute.xlu0 %118
    %122 = vset.pattern.permute.xlu0 0
    %123 = vperm.xlu0 %122, %v101
    %v124 = vpop.permute.xlu0 %123
    %127 = vset.pattern.permute.xlu0 0
    %128 = vperm.xlu0 %127, %v102
    %v129 = vpop.permute.xlu0 %128
    %132 = vset.pattern.permute.xlu0 0
    %133 = vperm.xlu0 %132, %v103
    %v134 = vpop.permute.xlu0 %133
    %137 = vset.pattern.permute.xlu0 0
    %138 = vperm.xlu0 %137, %v104
    %v139 = vpop.permute.xlu0 %138
    %142 = vset.pattern.permute.xlu0 0
    %143 = vperm.xlu0 %142, %v105
    %v144 = vpop.permute.xlu0 %143
    %147 = vset.pattern.permute.xlu0 0
    %148 = vperm.xlu0 %147, %v106
    %v149 = vpop.permute.xlu0 %148
    %152 = vset.pattern.permute.xlu0 0
    %153 = vperm.xlu0 %152, %v107
    %v154 = vpop.permute.xlu0 %153
    %157 = vset.pattern.permute.xlu0 0
    %158 = vperm.xlu0 %157, %v108
    %v159 = vpop.permute.xlu0 %158
    %162 = vset.pattern.permute.xlu0 0
    %163 = vperm.xlu0 %162, %v109
    %v164 = vpop.permute.xlu0 %163
    %167 = vset.pattern.permute.xlu0 0
    %168 = vperm.xlu0 %167, %v110
    %v169 = vpop.permute.xlu0 %168
    %172 = vset.pattern.permute.xlu0 0
    %173 = vperm.xlu0 %172, %v111
    %v174 = vpop.permute.xlu0 %173
    %177 = vset.pattern.permute.xlu0 0
    %178 = vperm.xlu0 %177, %v112
    %v179 = vpop.permute.xlu0 %178
    %182 = vset.pattern.permute.xlu0 0
    %183 = vperm.xlu0 %182, %v113
    %v184 = vpop.permute.xlu0 %183
    %187 = vset.pattern.permute.xlu0 0
    %188 = vperm.xlu0 %187, %v114
    %v189 = vpop.permute.xlu0 %188
    %192 = vset.pattern.permute.xlu0 0
    %193 = vperm.xlu0 %192, %v115
    %v194 = vpop.permute.xlu0 %193
    %v212 = vunpack.c.l.b16 %v84
    %v213 = vunpack.c.l.b16 %v85
    %v214 = vunpack.c.l.b16 %v86
    %v215 = vunpack.c.l.b16 %v87
    %v216 = vunpack.c.l.b16 %v88
    %v217 = vunpack.c.l.b16 %v89
    %v218 = vunpack.c.l.b16 %v90
    %v219 = vunpack.c.l.b16 %v91
    %v220 = vunpack.c.l.b16 %v92
    %v221 = vunpack.c.l.b16 %v93
    %v222 = vunpack.c.l.b16 %v94
    %v223 = vunpack.c.l.b16 %v95
    %v224 = vunpack.c.l.b16 %v96
    %v225 = vunpack.c.l.b16 %v97
    %v226 = vunpack.c.l.b16 %v98
    %v227 = vunpack.c.l.b16 %v99
    %v228 = vpack.c.b16 %v213, %v212
    %v229 = vpack.c.b16 %v215, %v214
    %v230 = vpack.c.b16 %v217, %v216
    %v231 = vpack.c.b16 %v219, %v218
    %v232 = vpack.c.b16 %v221, %v220
    %v233 = vpack.c.b16 %v223, %v222
    %v234 = vpack.c.b16 %v225, %v224
    %v235 = vpack.c.b16 %v227, %v226
    %vm236 = vcmask 261120
    %v238 = vsel %vm236, %v228, 0
    %v241 = vsel %vm236, %v229, 0
    %v244 = vsel %vm236, %v230, 0
    %v247 = vsel %vm236, %v231, 0
    %v250 = vsel %vm236, %v232, 0
    %v253 = vsel %vm236, %v233, 0
    %v256 = vsel %vm236, %v234, 0
    %v259 = vsel %vm236, %v235, 0
    %261 = vmatprep.subr.bf16.mxu0 0
    %262 = vmatpush1.bf16.msra.mxu0 0
    %263 = vmatprep.subr.bf16.mxu0 0
    %264 = vmatpush1.bf16.msra.mxu0 0
    %265 = vmatprep.subr.bf16.mxu0 0
    %266 = vmatpush1.bf16.msra.mxu0 0
    %267 = vmatprep.subr.bf16.mxu0 0
    %268 = vmatpush1.bf16.msra.mxu0 0
    %269 = vmatprep.subr.bf16.mxu0 0
    %270 = vmatpush1.bf16.msra.mxu0 0
    %271 = vmatprep.subr.bf16.mxu0 0
    %272 = vmatpush1.bf16.msra.mxu0 0
    %273 = vmatprep.subr.bf16.mxu0 0
    %274 = vmatpush1.bf16.msra.mxu0 %v83
    %275 = vmatprep.subr.bf16.mxu0 0
    %276 = vmatpush1.bf16.msra.mxu0 %v82
    %277 = vmatprep.subr.bf16.mxu0 0
    %278 = vmatpush2.bf16.msra.mxu0 0
    %279 = vmatprep.subr.bf16.mxu0 0
    %280 = vmatpush2.bf16.msra.mxu0 0
    %281 = vmatprep.subr.bf16.mxu0 0
    %282 = vmatpush2.bf16.msra.mxu0 0
    %283 = vmatprep.subr.bf16.mxu0 0
    %284 = vmatpush2.bf16.msra.mxu0 0
    %285 = vmatprep.subr.bf16.mxu0 0
    %286 = vmatpush2.bf16.msra.mxu0 0
    %287 = vmatprep.subr.bf16.mxu0 0
    %288 = vmatpush2.bf16.msra.mxu0 0
    %289 = vmatprep.subr.bf16.mxu0 0
    %290 = vmatpush2.bf16.msra.mxu0 0
    %291 = vmatprep.subr.bf16.mxu0 0
    %292 = vmatpush2.bf16.msra.mxu0 0
    %293 = vmatprep.mubr.bf16.mxu0 0
    %294 = vmatmul.mubr.bf16.gmra.mxu0 %v238
    %v295 = vpop.f32.mrf.mxu0
    %v296 = vadd.f32 %v119, %v295
    %v297 = vpop.f32.mrf.mxu0
    %v298 = vpop.f32.mrf.mxu0
    %v299 = vadd.f32 %v124, %v298
    %v300 = vpop.f32.mrf.mxu0
    %301 = vmatprep.mubr.bf16.mxu0 0
    %302 = vmatmul.mubr.bf16.gmra.mxu0 %v241
    %v303 = vpop.f32.mrf.mxu0
    %v304 = vadd.f32 %v129, %v303
    %v305 = vpop.f32.mrf.mxu0
    %v306 = vpop.f32.mrf.mxu0
    %v307 = vadd.f32 %v134, %v306
    %v308 = vpop.f32.mrf.mxu0
    %309 = vmatprep.mubr.bf16.mxu0 0
    %310 = vmatmul.mubr.bf16.gmra.mxu0 %v244
    %v311 = vpop.f32.mrf.mxu0
    %v312 = vadd.f32 %v139, %v311
    %v313 = vpop.f32.mrf.mxu0
    %v314 = vpop.f32.mrf.mxu0
    %v315 = vadd.f32 %v144, %v314
    %v316 = vpop.f32.mrf.mxu0
    %317 = vmatprep.mubr.bf16.mxu0 0
    %318 = vmatmul.mubr.bf16.gmra.mxu0 %v247
    %v319 = vpop.f32.mrf.mxu0
    %v320 = vadd.f32 %v149, %v319
    %v321 = vpop.f32.mrf.mxu0
    %v322 = vpop.f32.mrf.mxu0
    %v323 = vadd.f32 %v154, %v322
    %v324 = vpop.f32.mrf.mxu0
    %325 = vmatprep.mubr.bf16.mxu0 0
    %326 = vmatmul.mubr.bf16.gmra.mxu0 %v250
    %v327 = vpop.f32.mrf.mxu0
    %v328 = vadd.f32 %v159, %v327
    %v329 = vpop.f32.mrf.mxu0
    %v330 = vpop.f32.mrf.mxu0
    %v331 = vadd.f32 %v164, %v330
    %v332 = vpop.f32.mrf.mxu0
    %333 = vmatprep.mubr.bf16.mxu0 0
    %334 = vmatmul.mubr.bf16.gmra.mxu0 %v253
    %v335 = vpop.f32.mrf.mxu0
    %v336 = vadd.f32 %v169, %v335
    %v337 = vpop.f32.mrf.mxu0
    %v338 = vpop.f32.mrf.mxu0
    %v339 = vadd.f32 %v174, %v338
    %v340 = vpop.f32.mrf.mxu0
    %341 = vmatprep.mubr.bf16.mxu0 0
    %342 = vmatmul.mubr.bf16.gmra.mxu0 %v256
    %v343 = vpop.f32.mrf.mxu0
    %v344 = vadd.f32 %v179, %v343
    %v345 = vpop.f32.mrf.mxu0
    %v346 = vpop.f32.mrf.mxu0
    %v347 = vadd.f32 %v184, %v346
    %v348 = vpop.f32.mrf.mxu0
    %349 = vmatprep.mubr.bf16.mxu0 0
    %350 = vmatmul.mubr.bf16.gmra.mxu0 %v259
    %v351 = vpop.f32.mrf.mxu0
    %v352 = vadd.f32 %v189, %v351
    %v353 = vpop.f32.mrf.mxu0
    %v354 = vpop.f32.mrf.mxu0
    %v355 = vadd.f32 %v194, %v354
    %v356 = vpop.f32.mrf.mxu0
    %357 = vdwg.mxu0
    %v358 = vtanh.pop %v296
    %v359 = vtanh.pop %v299
    %v360 = vtanh.pop %v304
    %v361 = vtanh.pop %v307
    %v362 = vtanh.pop %v312
    %v363 = vtanh.pop %v315
    %v364 = vtanh.pop %v320
    %v365 = vtanh.pop %v323
    %v366 = vtanh.pop %v328
    %v367 = vtanh.pop %v331
    %v368 = vtanh.pop %v336
    %v369 = vtanh.pop %v339
    %v370 = vtanh.pop %v344
    %v371 = vtanh.pop %v347
    %v372 = vtanh.pop %v352
    %v373 = vtanh.pop %v355
    %v374 = vld [vmem:[%s4] sm:$0xf]
    %v375 = vld [vmem:[%s4 + $0x4] sm:$0xf]
    %v376 = vld [vmem:[%s4 + $0x8] sm:$0xf]
    %v377 = vld [vmem:[%s4 + $0xc] sm:$0xf]
    %v378 = vld [vmem:[%s4 + $0x10] sm:$0xf]
    %v379 = vld [vmem:[%s4 + $0x14] sm:$0xf]
    %v380 = vld [vmem:[%s4 + $0x18] sm:$0xf]
    %v381 = vld [vmem:[%s4 + $0x1c] sm:$0xf]
    %v382 = vld [vmem:[%s4 + $0x20] sm:$0xf]
    %v383 = vld [vmem:[%s4 + $0x24] sm:$0xf]
    %v384 = vld [vmem:[%s4 + $0x28] sm:$0xf]
    %v385 = vld [vmem:[%s4 + $0x2c] sm:$0xf]
    %v386 = vld [vmem:[%s4 + $0x30] sm:$0xf]
    %v387 = vld [vmem:[%s4 + $0x34] sm:$0xf]
    %v388 = vld [vmem:[%s4 + $0x38] sm:$0xf]
    %v389 = vld [vmem:[%s4 + $0x3c] sm:$0xf]
    %v390 = vpack.c.bf16 %v359, %v358
    %v391 = vpack.c.bf16 %v361, %v360
    %v392 = vpack.c.bf16 %v363, %v362
    %v393 = vpack.c.bf16 %v365, %v364
    %v394 = vpack.c.bf16 %v367, %v366
    %v395 = vpack.c.bf16 %v369, %v368
    %v396 = vpack.c.bf16 %v371, %v370
    %v397 = vpack.c.bf16 %v373, %v372
    %v398 = vld [vmem:[%s5] sm:$0xff]
    %v399 = vld [vmem:[%s5 + $0x8] sm:$0xff]
    %v400 = vld [vmem:[%s5 + $0x10] sm:$0xff]
    %v401 = vld [vmem:[%s5 + $0x18] sm:$0xff]
    %v402 = vld [vmem:[%s5 + $0x20] sm:$0xff]
    %v403 = vld [vmem:[%s5 + $0x28] sm:$0xff]
    %v404 = vld [vmem:[%s5 + $0x30] sm:$0xff]
    %v405 = vld [vmem:[%s5 + $0x38] sm:$0xff]
    %v406 = vld [vmem:[%s5 + $0x40] sm:$0xff]
    %v407 = vld [vmem:[%s5 + $0x48] sm:$0xff]
    %v408 = vld [vmem:[%s5 + $0x50] sm:$0xff]
    %v409 = vld [vmem:[%s5 + $0x58] sm:$0xff]
    %v410 = vld [vmem:[%s5 + $0x60] sm:$0xff]
    %v411 = vld [vmem:[%s5 + $0x68] sm:$0xff]
    %v412 = vld [vmem:[%s5 + $0x70] sm:$0xff]
    %v413 = vld [vmem:[%s5 + $0x78] sm:$0xff]
    %415 = vset.pattern.permute.xlu0 0
    %416 = vperm.xlu0 %415, %v398
    %v417 = vpop.permute.xlu0 %416
    %420 = vset.pattern.permute.xlu0 0
    %421 = vperm.xlu0 %420, %v399
    %v422 = vpop.permute.xlu0 %421
    %425 = vset.pattern.permute.xlu0 0
    %426 = vperm.xlu0 %425, %v400
    %v427 = vpop.permute.xlu0 %426
    %430 = vset.pattern.permute.xlu0 0
    %431 = vperm.xlu0 %430, %v401
    %v432 = vpop.permute.xlu0 %431
    %435 = vset.pattern.permute.xlu0 0
    %436 = vperm.xlu0 %435, %v402
    %v437 = vpop.permute.xlu0 %436
    %440 = vset.pattern.permute.xlu0 0
    %441 = vperm.xlu0 %440, %v403
    %v442 = vpop.permute.xlu0 %441
    %445 = vset.pattern.permute.xlu0 0
    %446 = vperm.xlu0 %445, %v404
    %v447 = vpop.permute.xlu0 %446
    %450 = vset.pattern.permute.xlu0 0
    %451 = vperm.xlu0 %450, %v405
    %v452 = vpop.permute.xlu0 %451
    %455 = vset.pattern.permute.xlu0 0
    %456 = vperm.xlu0 %455, %v406
    %v457 = vpop.permute.xlu0 %456
    %460 = vset.pattern.permute.xlu0 0
    %461 = vperm.xlu0 %460, %v407
    %v462 = vpop.permute.xlu0 %461
    %465 = vset.pattern.permute.xlu0 0
    %466 = vperm.xlu0 %465, %v408
    %v467 = vpop.permute.xlu0 %466
    %470 = vset.pattern.permute.xlu0 0
    %471 = vperm.xlu0 %470, %v409
    %v472 = vpop.permute.xlu0 %471
    %475 = vset.pattern.permute.xlu0 0
    %476 = vperm.xlu0 %475, %v410
    %v477 = vpop.permute.xlu0 %476
    %480 = vset.pattern.permute.xlu0 0
    %481 = vperm.xlu0 %480, %v411
    %v482 = vpop.permute.xlu0 %481
    %485 = vset.pattern.permute.xlu0 0
    %486 = vperm.xlu0 %485, %v412
    %v487 = vpop.permute.xlu0 %486
    %490 = vset.pattern.permute.xlu0 0
    %491 = vperm.xlu0 %490, %v413
    %v492 = vpop.permute.xlu0 %491
    %v510 = vunpack.c.l.b16 %v374
    %v511 = vunpack.c.l.b16 %v375
    %v512 = vunpack.c.l.b16 %v376
    %v513 = vunpack.c.l.b16 %v377
    %v514 = vunpack.c.l.b16 %v378
    %v515 = vunpack.c.l.b16 %v379
    %v516 = vunpack.c.l.b16 %v380
    %v517 = vunpack.c.l.b16 %v381
    %v518 = vunpack.c.l.b16 %v382
    %v519 = vunpack.c.l.b16 %v383
    %v520 = vunpack.c.l.b16 %v384
    %v521 = vunpack.c.l.b16 %v385
    %v522 = vunpack.c.l.b16 %v386
    %v523 = vunpack.c.l.b16 %v387
    %v524 = vunpack.c.l.b16 %v388
    %v525 = vunpack.c.l.b16 %v389
    %v526 = vpack.c.b16 %v511, %v510
    %v527 = vpack.c.b16 %v513, %v512
    %v528 = vpack.c.b16 %v515, %v514
    %v529 = vpack.c.b16 %v517, %v516
    %v530 = vpack.c.b16 %v519, %v518
    %v531 = vpack.c.b16 %v521, %v520
    %v532 = vpack.c.b16 %v523, %v522
    %v533 = vpack.c.b16 %v525, %v524
    %542 = vmatprep.subr.bf16.mxu0 0
    %543 = vmatpush1.bf16.msra.mxu0 %v397
    %544 = vmatprep.subr.bf16.mxu0 0
    %545 = vmatpush1.bf16.msra.mxu0 %v396
    %546 = vmatprep.subr.bf16.mxu0 0
    %547 = vmatpush1.bf16.msra.mxu0 %v395
    %548 = vmatprep.subr.bf16.mxu0 0
    %549 = vmatpush1.bf16.msra.mxu0 %v394
    %550 = vmatprep.subr.bf16.mxu0 0
    %551 = vmatpush1.bf16.msra.mxu0 %v393
    %552 = vmatprep.subr.bf16.mxu0 0
    %553 = vmatpush1.bf16.msra.mxu0 %v392
    %554 = vmatprep.subr.bf16.mxu0 0
    %555 = vmatpush1.bf16.msra.mxu0 %v391
    %556 = vmatprep.subr.bf16.mxu0 0
    %557 = vmatpush1.bf16.msra.mxu0 %v390
    %558 = vmatprep.subr.bf16.mxu0 0
    %559 = vmatpush2.bf16.msra.mxu0 0
    %560 = vmatprep.subr.bf16.mxu0 0
    %561 = vmatpush2.bf16.msra.mxu0 0
    %562 = vmatprep.subr.bf16.mxu0 0
    %563 = vmatpush2.bf16.msra.mxu0 0
    %564 = vmatprep.subr.bf16.mxu0 0
    %565 = vmatpush2.bf16.msra.mxu0 0
    %566 = vmatprep.subr.bf16.mxu0 0
    %567 = vmatpush2.bf16.msra.mxu0 0
    %568 = vmatprep.subr.bf16.mxu0 0
    %569 = vmatpush2.bf16.msra.mxu0 0
    %570 = vmatprep.subr.bf16.mxu0 0
    %571 = vmatpush2.bf16.msra.mxu0 0
    %572 = vmatprep.subr.bf16.mxu0 0
    %573 = vmatpush2.bf16.msra.mxu0 0
    %574 = vmatprep.mubr.bf16.mxu0 0
    %575 = vmatmul.mubr.bf16.gmra.mxu0 %v526
    %v576 = vpop.f32.mrf.mxu0
    %v577 = vadd.f32 %v417, %v576
    %v578 = vpop.f32.mrf.mxu0
    %v579 = vpop.f32.mrf.mxu0
    %v580 = vadd.f32 %v422, %v579
    %v581 = vpop.f32.mrf.mxu0
    %582 = vmatprep.mubr.bf16.mxu0 0
    %583 = vmatmul.mubr.bf16.gmra.mxu0 %v527
    %v584 = vpop.f32.mrf.mxu0
    %v585 = vadd.f32 %v427, %v584
    %v586 = vpop.f32.mrf.mxu0
    %v587 = vpop.f32.mrf.mxu0
    %v588 = vadd.f32 %v432, %v587
    %v589 = vpop.f32.mrf.mxu0
    %590 = vmatprep.mubr.bf16.mxu0 0
    %591 = vmatmul.mubr.bf16.gmra.mxu0 %v528
    %v592 = vpop.f32.mrf.mxu0
    %v593 = vadd.f32 %v437, %v592
    %v594 = vpop.f32.mrf.mxu0
    %v595 = vpop.f32.mrf.mxu0
    %v596 = vadd.f32 %v442, %v595
    %v597 = vpop.f32.mrf.mxu0
    %598 = vmatprep.mubr.bf16.mxu0 0
    %599 = vmatmul.mubr.bf16.gmra.mxu0 %v529
    %v600 = vpop.f32.mrf.mxu0
    %v601 = vadd.f32 %v447, %v600
    %v602 = vpop.f32.mrf.mxu0
    %v603 = vpop.f32.mrf.mxu0
    %v604 = vadd.f32 %v452, %v603
    %v605 = vpop.f32.mrf.mxu0
    %606 = vmatprep.mubr.bf16.mxu0 0
    %607 = vmatmul.mubr.bf16.gmra.mxu0 %v530
    %v608 = vpop.f32.mrf.mxu0
    %v609 = vadd.f32 %v457, %v608
    %v610 = vpop.f32.mrf.mxu0
    %v611 = vpop.f32.mrf.mxu0
    %v612 = vadd.f32 %v462, %v611
    %v613 = vpop.f32.mrf.mxu0
    %614 = vmatprep.mubr.bf16.mxu0 0
    %615 = vmatmul.mubr.bf16.gmra.mxu0 %v531
    %v616 = vpop.f32.mrf.mxu0
    %v617 = vadd.f32 %v467, %v616
    %v618 = vpop.f32.mrf.mxu0
    %v619 = vpop.f32.mrf.mxu0
    %v620 = vadd.f32 %v472, %v619
    %v621 = vpop.f32.mrf.mxu0
    %622 = vmatprep.mubr.bf16.mxu0 0
    %623 = vmatmul.mubr.bf16.gmra.mxu0 %v532
    %v624 = vpop.f32.mrf.mxu0
    %v625 = vadd.f32 %v477, %v624
    %v626 = vpop.f32.mrf.mxu0
    %v627 = vpop.f32.mrf.mxu0
    %v628 = vadd.f32 %v482, %v627
    %v629 = vpop.f32.mrf.mxu0
    %630 = vmatprep.mubr.bf16.mxu0 0
    %631 = vmatmul.mubr.bf16.gmra.mxu0 %v533
    %v632 = vpop.f32.mrf.mxu0
    %v633 = vadd.f32 %v487, %v632
    %v634 = vpop.f32.mrf.mxu0
    %v635 = vpop.f32.mrf.mxu0
    %v636 = vadd.f32 %v492, %v635
    %v637 = vpop.f32.mrf.mxu0
    %638 = vdwg.mxu0
    %v639 = vtanh.pop %v577
    %v640 = vtanh.pop %v580
    %v641 = vtanh.pop %v585
    %v642 = vtanh.pop %v588
    %v643 = vtanh.pop %v593
    %v644 = vtanh.pop %v596
    %v645 = vtanh.pop %v601
    %v646 = vtanh.pop %v604
    %v647 = vtanh.pop %v609
    %v648 = vtanh.pop %v612
    %v649 = vtanh.pop %v617
    %v650 = vtanh.pop %v620
    %v651 = vtanh.pop %v625
    %v652 = vtanh.pop %v628
    %v653 = vtanh.pop %v633
    %v654 = vtanh.pop %v636
    %v655 = vld [vmem:[%s6] sm:$0xf]
    %v656 = vld [vmem:[%s6 + $0x4] sm:$0x1]
    %v657 = vpack.c.bf16 %v640, %v639
    %v658 = vpack.c.bf16 %v642, %v641
    %v659 = vpack.c.bf16 %v644, %v643
    %v660 = vpack.c.bf16 %v646, %v645
    %v661 = vpack.c.bf16 %v648, %v647
    %v662 = vpack.c.bf16 %v650, %v649
    %v663 = vpack.c.bf16 %v652, %v651
    %v664 = vpack.c.bf16 %v654, %v653
    %v665 = vld [vmem:[%s7] sm:$0xff]
    %v666 = vld [vmem:[%s7 + $0x8] sm:$0x1]
    %668 = vset.pattern.permute.xlu0 0
    %669 = vperm.xlu0 %668, %v665
    %v670 = vpop.permute.xlu0 %669
    %673 = vset.pattern.permute.xlu0 0
    %674 = vperm.xlu0 %673, %v666
    %v675 = vpop.permute.xlu0 %674
    %v679 = vunpack.c.l.b16 %v655
    %v680 = vunpack.c.l.b16 %v656
    %v681 = vpack.c.b16 %v680, %v679
    %683 = vmatprep.subr.bf16.mxu0 0
    %684 = vmatpush1.bf16.msra.mxu0 %v664
    %685 = vmatprep.subr.bf16.mxu0 0
    %686 = vmatpush1.bf16.msra.mxu0 %v663
    %687 = vmatprep.subr.bf16.mxu0 0
    %688 = vmatpush1.bf16.msra.mxu0 %v662
    %689 = vmatprep.subr.bf16.mxu0 0
    %690 = vmatpush1.bf16.msra.mxu0 %v661
    %691 = vmatprep.subr.bf16.mxu0 0
    %692 = vmatpush1.bf16.msra.mxu0 %v660
    %693 = vmatprep.subr.bf16.mxu0 0
    %694 = vmatpush1.bf16.msra.mxu0 %v659
    %695 = vmatprep.subr.bf16.mxu0 0
    %696 = vmatpush1.bf16.msra.mxu0 %v658
    %697 = vmatprep.subr.bf16.mxu0 0
    %698 = vmatpush1.bf16.msra.mxu0 %v657
    %699 = vmatprep.subr.bf16.mxu0 0
    %700 = vmatpush2.bf16.msra.mxu0 0
    %701 = vmatprep.subr.bf16.mxu0 0
    %702 = vmatpush2.bf16.msra.mxu0 0
    %703 = vmatprep.subr.bf16.mxu0 0
    %704 = vmatpush2.bf16.msra.mxu0 0
    %705 = vmatprep.subr.bf16.mxu0 0
    %706 = vmatpush2.bf16.msra.mxu0 0
    %707 = vmatprep.subr.bf16.mxu0 0
    %708 = vmatpush2.bf16.msra.mxu0 0
    %709 = vmatprep.subr.bf16.mxu0 0
    %710 = vmatpush2.bf16.msra.mxu0 0
    %711 = vmatprep.subr.bf16.mxu0 0
    %712 = vmatpush2.bf16.msra.mxu0 0
    %713 = vmatprep.subr.bf16.mxu0 0
    %714 = vmatpush2.bf16.msra.mxu0 0
    %715 = vmatprep.mubr.bf16.mxu0 0
    %716 = vmatmul.mubr.bf16.gmra.mxu0 %v681
    %v717 = vpop.f32.mrf.mxu0
    %v718 = vadd.f32 %v670, %v717
    %v719 = vpop.f32.mrf.mxu0
    %v720 = vpop.f32.mrf.mxu0
    %v721 = vadd.f32 %v675, %v720
    %v722 = vpop.f32.mrf.mxu0
    %723 = vdwg.mxu0
    %v724 = vtanh.pop %v718
    %v725 = vld [vmem:[%s8] sm:$0xff]
    %v726 = vld [vmem:[%s8 + $0x8] sm:$0x1]
    %v727 = vld [vmem:[%s1] sm:$0xff]
    %v728 = vld [vmem:[%s1 + $0x8] sm:$0xff]
    %v729 = vld [vmem:[%s1 + $0x10] sm:$0xff]
    %v730 = vld [vmem:[%s1 + $0x18] sm:$0xff]
    %v731 = vld [vmem:[%s1 + $0x20] sm:$0xff]
    %v732 = vld [vmem:[%s1 + $0x28] sm:$0xff]
    %v733 = vld [vmem:[%s1 + $0x30] sm:$0xff]
    %v734 = vld [vmem:[%s1 + $0x38] sm:$0xff]
    %v735 = vld [vmem:[%s1 + $0x40] sm:$0xff]
    %v736 = vld [vmem:[%s1 + $0x48] sm:$0xff]
    %v737 = vld [vmem:[%s1 + $0x50] sm:$0xff]
    %v738 = vld [vmem:[%s1 + $0x58] sm:$0xff]
    %v739 = vld [vmem:[%s1 + $0x60] sm:$0xff]
    %v740 = vld [vmem:[%s1 + $0x68] sm:$0xff]
    %v741 = vld [vmem:[%s1 + $0x70] sm:$0xff]
    %v742 = vld [vmem:[%s1 + $0x78] sm:$0xff]
    %743 = vxpose.xlu0.b32.start [1/16] %v727, 128
    %744 = vxpose.xlu0.b32.cont [2/16] %v728, 128
    %745 = vxpose.xlu0.b32.cont [3/16] %v729, 128
    %746 = vxpose.xlu0.b32.cont [4/16] %v730, 128
    %747 = vxpose.xlu0.b32.cont [5/16] %v731, 128
    %748 = vxpose.xlu0.b32.cont [6/16] %v732, 128
    %749 = vxpose.xlu0.b32.cont [7/16] %v733, 128
    %750 = vxpose.xlu0.b32.cont [8/16] %v734, 128
    %751 = vxpose.xlu0.b32.cont [9/16] %v735, 128
    %752 = vxpose.xlu0.b32.cont [10/16] %v736, 128
    %753 = vxpose.xlu0.b32.cont [11/16] %v737, 128
    %754 = vxpose.xlu0.b32.cont [12/16] %v738, 128
    %755 = vxpose.xlu0.b32.cont [13/16] %v739, 128
    %756 = vxpose.xlu0.b32.cont [14/16] %v740, 128
    %757 = vxpose.xlu0.b32.cont [15/16] %v741, 128
    %758 = vxpose.xlu0.b32.end [16/16] %v742, 128
    %v759 = vpop.trf.xlu0
    %v760 = vpop.trf.xlu0
    %v761 = vpop.trf.xlu0
    %v762 = vpop.trf.xlu0
    %v763 = vpop.trf.xlu0
    %v764 = vpop.trf.xlu0
    %v765 = vpop.trf.xlu0
    %v766 = vpop.trf.xlu0
    %v767 = vpop.trf.xlu0
    %v768 = vpop.trf.xlu0
    %v769 = vpop.trf.xlu0
    %v770 = vpop.trf.xlu0
    %v771 = vpop.trf.xlu0
    %v772 = vpop.trf.xlu0
    %v773 = vpop.trf.xlu0
    %v774 = vpop.trf.xlu0
    %v775 = vsub.f32 %v759, %v724
    %v776 = vmul.f32 %v775, %v775
    %778 = vset.pattern.permute.xlu0 0
    %779 = vperm.xlu0 %778, %v725
    %v780 = vpop.permute.xlu0 %779
    %v782 = vmul.f32 %v776, %v780
    %v783 = vrot.slane %v782, 4
    %v784 = vadd.f32 %v782, %v783
    %v785 = vrot.slane %v784, 2
    %v786 = vadd.f32 %v784, %v785
    %v787 = vrot.slane %v786, 1
    %v788 = vadd.f32 %v786, %v787
    %v789 = vmul.f32 %v788, -0.5
    %791 = vset.pattern.permute.xlu0 0
    %792 = vperm.xlu0 %791, %v726
    %v793 = vpop.permute.xlu0 %792
    %v795 = vadd.f32 %v789, %v793
    %v796 = vlaneseq
    %v797 = vshrl.u32 %v796, 7
    %vm798 = vcmp.eq.s32.totalorder %v797, 0
    %v799 = vlaneseq
    %v800 = vshrl.u32 %v799, 7
    %v801 = vsub.s32 0, %v800
    %v802 = vrot.slane %v795, %v801
    %v803 = vlaneseq
    %v804 = vshrl.u32 %v803, 7
    %v805 = vsub.s32 0, %v804
    %v806 = vrot.slane %v721, %v805
    %v807 = vsel %vm798, %v802, %v806
    %808 = vst [vmem:[#allocation2] sm:$0x3] %v807
    // Predicated region
    $region38: #{tpu_custom_call.1} parent=1 // pred_check
      _
    $region39: #{tpu_custom_call.1} parent=1 // pred_check_branch
      %810 = sbr.rel (0) target = $region41
    $region40: #{tpu_custom_call.1} parent=1 // pred_region
      %s812 = ssub.s32 32, 32
      %813 = vsyncadd [#allocation3], %s812
      %s815 = sshll.u32 [#allocation2], 4
      %s816 = int_to_ptr.vmem [resolvable:$true] %s815
      %818 = dma.vmem_to_hbm [thread:$0]  %s816, 32, %s9, [#allocation3]
    $region41: #{tpu_custom_call.1} parent=1 // pred_fallthru
      _
    // Predicated region
    $region42: #{tpu_custom_call.1} parent=1 // pred_check
      _
    $region43: #{tpu_custom_call.1} parent=1 // pred_check_branch
      %820 = sbr.rel (0) target = $region45
    $region44: #{tpu_custom_call.1} parent=1 // pred_region
      %821 = dma.done [#allocation3], 32
    $region45: #{tpu_custom_call.1} parent=1 // pred_fallthru
      _
    %822 = vsyncpa [#allocation3], 1

</llo_original>
